<compile_context>
chip_gen: v5e
topology: v5e:2x2
jax: 0.10.0
libtpu: 0.0.40
codegen_flags: <defaults>
</compile_context>

<pallas_src>
import jax
import jax.numpy as jnp
from jax.experimental import pallas as pl
from jax.experimental.pallas import tpu as pltpu


def _add_kernel(a_ref, b_ref, o_ref):
    # Pure VPU elementwise add on the current VMEM tile.
    o_ref[...] = a_ref[...] + b_ref[...]


def _round_up(x, m):
    return -(-x // m) * m


def pallas_add(x77, x67, *, min_grid=2, max_block_bytes=2 << 20):
    """Elementwise add (operator.add) of two identically-shaped arrays.

    Tiling strategy (per perf review):
      * reshape the flat data to the widest lane-dense slab [rows, lane]
        (lane in {1024, 512, 256, 128}) so DMAs / vector stores are large and
        unmasked;
      * fixed row tile (multiple of 8) with grid = pl.cdiv(rows, tile) and a
        Pallas-masked ragged last block -- no tile-divisor search, no jnp.pad
        pre-pass (which would double HBM traffic);
      * keep the grid >= 2 so both v7x TensorCores get work, and cap per-block
        bytes so 3 arrays x 2 pipeline buffers stay far under the smallest
        scoped-VMEM default (16 MiB on v5e).
    """
    assert x77.shape == x67.shape and x77.dtype == x67.dtype
    orig_shape = x77.shape
    total = x77.size
    itemsize = jnp.dtype(x77.dtype).itemsize

    # Widest lane width that divides the element count (200704 -> 1024).
    lane = None
    for cand in (1024, 512, 256, 128):
        if total % cand == 0:
            lane = cand
            break
    if lane is None:
        # TODO(synk): non-multiple-of-128 element counts would need a masked
        # 1-D tail path; every shape this module produces is a multiple of 1024.
        raise NotImplementedError("element count must be a multiple of 128")

    rows = total // lane
    a2 = x77.reshape(rows, lane)
    b2 = x67.reshape(rows, lane)

    # Fixed row tile: multiple of 8, at least `min_grid` grid steps, capped by
    # a per-block byte budget.  The ragged last block is masked by Pallas.
    if rows <= 8:
        tr = rows                                    # full-dim block is legal
    else:
        tr_split = _round_up(pl.cdiv(rows, min_grid), 8)
        tr_cap = max(8, (max_block_bytes // (lane * itemsize)) // 8 * 8)
        tr = min(tr_split, tr_cap, _round_up(rows, 8))

    grid = (pl.cdiv(rows, tr),)

    out2 = pl.pallas_call(
        _add_kernel,
        out_shape=jax.ShapeDtypeStruct((rows, lane), x77.dtype),
        grid_spec=pltpu.PrefetchScalarGridSpec(
            num_scalar_prefetch=0,
            grid=grid,
            in_specs=[
                pl.BlockSpec((tr, lane), lambda i: (i, 0)),
                pl.BlockSpec((tr, lane), lambda i: (i, 0)),
            ],
            out_specs=pl.BlockSpec((tr, lane), lambda i: (i, 0)),
        ),
        compiler_params=pltpu.CompilerParams(
            dimension_semantics=("parallel",),
        ),
    )(a2, b2)

    # Exact-multiple path: reshape only (free); no slice / pad round-trip.
    return out2.reshape(orig_shape)


if __name__ == "__main__":
    key = jax.random.PRNGKey(0)
    k1, k2 = jax.random.split(key)
    # Shapes implied by the module's forward: [1, 256, 28, 28]
    x77 = jax.random.normal(k1, (1, 256, 28, 28), dtype=jnp.float32)
    x67 = jax.random.normal(k2, (1, 256, 28, 28), dtype=jnp.float32)

    out = pallas_add(x77, x67)
    jax.block_until_ready(out)

    # Correctness check against plain JAX reference.
    ref = x77 + x67
    assert out.shape == ref.shape
    assert jnp.allclose(out, ref, atol=1e-6, rtol=1e-6)

    print("KERNEL_OK")
</pallas_src>

<mosaic_0001>
module attributes {stable_mosaic.version = 11 : i64} {
  func.func @_add_kernel(%arg0: i32, %arg1: memref<104x1024xf32, #tpu.memory_space<vmem>>, %arg2: memref<104x1024xf32, #tpu.memory_space<vmem>>, %arg3: memref<104x1024xf32, #tpu.memory_space<vmem>>) attributes {dimension_semantics = [#tpu.dimension_semantics<parallel>], iteration_bounds = array<i64: 2>, scalar_prefetch = 0 : i64, scratch_operands = 0 : i64, tpu.core_type = #tpu.core_type<tc>, window_params = [{transform_indices = @transform_0, window_bounds = array<i64: 104, 1024>}, {transform_indices = @transform_1, window_bounds = array<i64: 104, 1024>}, {transform_indices = @transform_2, window_bounds = array<i64: 104, 1024>}]} {
    %c0 = arith.constant 0 : index
    %c0_0 = arith.constant 0 : index
    %0 = vector.load %arg1[%c0, %c0_0] : memref<104x1024xf32, #tpu.memory_space<vmem>>, vector<104x1024xf32>
    %c0_1 = arith.constant 0 : index
    %c0_2 = arith.constant 0 : index
    %1 = vector.load %arg2[%c0_1, %c0_2] : memref<104x1024xf32, #tpu.memory_space<vmem>>, vector<104x1024xf32>
    %2 = arith.addf %0, %1 : vector<104x1024xf32>
    %c0_3 = arith.constant 0 : index
    %c0_4 = arith.constant 0 : index
    %3 = vector.load %arg3[%c0_3, %c0_4] : memref<104x1024xf32, #tpu.memory_space<vmem>>, vector<104x1024xf32>
    tpu.vector_store %arg3[%c0_3, %c0_4], %2 {strides = array<i32>} : memref<104x1024xf32, #tpu.memory_space<vmem>>, vector<104x1024xf32>,
    return
  }
  func.func @transform_0(%arg0: i32) -> (i32, i32) {
    %c0_i32 = arith.constant 0 : i32
    %c0_i32_0 = arith.constant 0 : i32
    return %arg0, %c0_i32 : i32, i32
  }
  func.func @transform_1(%arg0: i32) -> (i32, i32) {
    %c0_i32 = arith.constant 0 : i32
    %c0_i32_0 = arith.constant 0 : i32
    return %arg0, %c0_i32 : i32, i32
  }
  func.func @transform_2(%arg0: i32) -> (i32, i32) {
    %c0_i32 = arith.constant 0 : i32
    %c0_i32_0 = arith.constant 0 : i32
    return %arg0, %c0_i32 : i32, i32
  }
}

</mosaic_0001>

<llo_original>
// kernel: tpu_custom_call.1
$region0: #{tpu_custom_call.1}
  #allocation0 [shape = 'u32[]', space=smem, size = 0x4, offset = 0x4, fixed_abs, tag = 'smem constant byte address 0x4 - core index']
  #allocation1 [shape = 'u32[72,128]{1,0:T(1,128)}', space=vmem, size = 0x9000, scoped, tag = 'internal scratch']
  %s0 = inlined_call_operand.hbm [shape: f32[196,1024], index: 0, kind: input, shape index: {}]
  %s1 = inlined_call_operand.hbm [shape: f32[196,1024], index: 1, kind: input, shape index: {}]
  %s2 = inlined_call_operand.hbm [shape: f32[196,1024], index: 2, kind: output, shape index: {}]
  %s3 = sld [smem:[#allocation0]]
  $region49: #{tpu_custom_call.1} parent=0
    _
  %s5 = ssub.s32 1, %s3
  %s6 = scalar_select 0, %s5, %s3
  $region1: #{tpu_custom_call.1} parent=0
    #allocation2 [shape = 'u8[851968]{0}', space=vmem, size = 0xd0000, scoped, tag = 'input window, operand 0']
    #allocation3 [shape = 's32[2]{0}', space=sflag, size = 0x8, scoped, tag = 'scoped memory for tpu_custom_call.1']
    #allocation4 [shape = 's32[2]{0}', space=sflag, size = 0x8, scoped, tag = 'scoped memory for tpu_custom_call.1']
    #allocation5 [shape = 'u8[851968]{0}', space=vmem, size = 0xd0000, scoped, tag = 'input window, operand 1']
    #allocation6 [shape = 's32[2]{0}', space=sflag, size = 0x8, scoped, tag = 'scoped memory for tpu_custom_call.1']
    #allocation7 [shape = 'u8[851968]{0}', space=vmem, size = 0xd0000, scoped, tag = 'output window, operand 0']
    %7 = vsyncpa [#allocation3], 0
    %s8 = scalar_lea.sflag [#allocation3], 1
    %9 = vsyncpa %s8, 0
    %10 = vsyncpa [#allocation6], 0
    %s11 = scalar_lea.sflag [#allocation6], 1
    %12 = vsyncpa %s11, 0
    %13 = vsyncpa [#allocation4], 0
    %s14 = scalar_lea.sflag [#allocation4], 1
    %15 = vsyncpa %s14, 0
    loop: start=0, step=1, limit=4
    $region2: #{tpu_custom_call.1} parent=1 // loop_pre_header
      _
    $region3: #{tpu_custom_call.1} parent=1 // loop_header
      %s17 = sphi 0, %s21
      %p18 = scmp.ge.s32.totalorder %s17, 4
      %s27 = sphi 0, %s29
      %s30 = sphi 0, %s27
      %s31 = sphi 0, %s30
      %s47 = sphi 0, %s31
      %s53 = sphi 0, %s55
      %s56 = sphi 0, %s53
      %s57 = sphi 0, %s56
      %s73 = sphi 0, %s57
      %s79 = sphi 0, %s81
      %s82 = sphi 0, %s79
      %s83 = sphi 0, %s82
      %s99 = sphi 0, %s83
    $region4: #{tpu_custom_call.1} parent=1 // loop_header_branch
      %20 = sbr.rel (%p18) target = $region8
    $region5: #{tpu_custom_call.1} parent=1 // loop_body
      %s22 = ssub.s32 %s17, 1
      %s23 = ssub.s32 %s17, 2
      %s24 = sadd.s32 %s17, 1
      %s25 = ssub.s32 %s17, %s24
      %p26 = scmp.eq.s32.totalorder %s25, 0
      %s28 = sadd.s32 %s27, 1
      %s29 = scalar_select %p26, %s27, %s28
      %p32 = pneg %p26
      %p33 = scmp.eq.s32.totalorder %s17, 1
      %p34 = por %p32, %p33
      %p35 = scmp.ne.s32.totalorder %s27, %s30
      %p36 = scmp.eq.s32.totalorder %s17, 0
      %p37 = por %p35, %p36
      %p38 = scmp.ne.s32.totalorder %s27, %s30
      %p39 = scmp.eq.s32.totalorder %s22, 1
      %p40 = por %p38, %p39
      %p41 = scmp.ne.s32.totalorder %s30, %s31
      %p42 = scmp.eq.s32.totalorder %s22, 0
      %p43 = por %p41, %p42
      %p44 = scmp.ne.s32.totalorder %s30, %s31
      %p45 = scmp.eq.s32.totalorder %s23, 1
      %p46 = por %p44, %p45
      %p48 = scmp.ne.s32.totalorder %s31, %s47
      %p49 = scmp.eq.s32.totalorder %s23, 0
      %p50 = por %p48, %p49
      %s51 = ssub.s32 %s17, %s24
      %p52 = scmp.eq.s32.totalorder %s51, 0
      %s54 = sadd.s32 %s53, 1
      %s55 = scalar_select %p52, %s53, %s54
      %p58 = pneg %p52
      %p59 = scmp.eq.s32.totalorder %s17, 1
      %p60 = por %p58, %p59
      %p61 = scmp.ne.s32.totalorder %s53, %s56
      %p62 = scmp.eq.s32.totalorder %s17, 0
      %p63 = por %p61, %p62
      %p64 = scmp.ne.s32.totalorder %s53, %s56
      %p65 = scmp.eq.s32.totalorder %s22, 1
      %p66 = por %p64, %p65
      %p67 = scmp.ne.s32.totalorder %s56, %s57
      %p68 = scmp.eq.s32.totalorder %s22, 0
      %p69 = por %p67, %p68
      %p70 = scmp.ne.s32.totalorder %s56, %s57
      %p71 = scmp.eq.s32.totalorder %s23, 1
      %p72 = por %p70, %p71
      %p74 = scmp.ne.s32.totalorder %s57, %s73
      %p75 = scmp.eq.s32.totalorder %s23, 0
      %p76 = por %p74, %p75
      %s77 = ssub.s32 %s17, %s24
      %p78 = scmp.eq.s32.totalorder %s77, 0
      %s80 = sadd.s32 %s79, 1
      %s81 = scalar_select %p78, %s79, %s80
      %p84 = pneg %p78
      %p85 = scmp.eq.s32.totalorder %s17, 1
      %p86 = por %p84, %p85
      %p87 = scmp.ne.s32.totalorder %s79, %s82
      %p88 = scmp.eq.s32.totalorder %s17, 0
      %p89 = por %p87, %p88
      %p90 = scmp.ne.s32.totalorder %s79, %s82
      %p91 = scmp.eq.s32.totalorder %s22, 1
      %p92 = por %p90, %p91
      %p93 = scmp.ne.s32.totalorder %s82, %s83
      %p94 = scmp.eq.s32.totalorder %s22, 0
      %p95 = por %p93, %p94
      %p96 = scmp.ne.s32.totalorder %s82, %s83
      %p97 = scmp.eq.s32.totalorder %s23, 1
      %p98 = por %p96, %p97
      %p100 = scmp.ne.s32.totalorder %s83, %s99
      %p101 = scmp.eq.s32.totalorder %s23, 0
      %p102 = por %p100, %p101
      %p103 = scmp.le.s32.totalorder 1, %s17
      %p104 = scmp.lt.s32.totalorder %s17, 3
      %p105 = pnand %p103, %p104
      %p106 = pneg %p105
      // Predicated region
      $region9: #{tpu_custom_call.1} parent=5 // pred_check
        _
      $region10: #{tpu_custom_call.1} parent=5 // pred_check_branch
        %108 = sbr.rel (%p105) target = $region12
      $region11: #{tpu_custom_call.1} parent=5 // pred_region
        %s109 = ssub.s32 %s17, 1
      $region12: #{tpu_custom_call.1} parent=5 // pred_fallthru
        _
      %p110 = scmp.lt.s32.totalorder %s17, 2
      // Predicated region
      $region13: #{tpu_custom_call.1} parent=5 // pred_check
        %p111 = pneg %p110
      $region14: #{tpu_custom_call.1} parent=5 // pred_check_branch
        %113 = sbr.rel (%p111) target = $region16
      $region15: #{tpu_custom_call.1} parent=5 // pred_region
        // Predicated region
        $region17: #{tpu_custom_call.1} parent=15 // pred_check
          %p114 = pneg %p37
        $region18: #{tpu_custom_call.1} parent=15 // pred_check_branch
          %116 = sbr.rel (%p114) target = $region20
        $region19: #{tpu_custom_call.1} parent=15 // pred_region
          %s117 = sand.u32 %s27, 1
          %s118 = scalar_lea.sflag [#allocation3], %s117
          %s119 = sand.u32 %s27, 1
          %s120 = smul.addr %s119, 832
          %s121 = scalar_lea.vmem [#allocation2], %s120
          %s122 = smul.u32 13, %s17
          %s123 = ssub.s32 25, %s122
          %p124 = scmp.lt.s32.totalorder %s123, 13
          %s125 = scalar_select %p124, %s123, 13
          %s126 = smul.u32 8, %s125
          %s127 = smul.u32 %s126, 8
          %s128 = ssub.s32 832, %s127
          %s129 = sshll.u32 %s128, 4
          %130 = vsyncadd %s118, %s129
          %p131 = scmp.ne.s32.totalorder 0, %s127
          %s132 = smul.addr %s122, 8
          %s133 = smul.addr %s132, 8
          %s134 = scalar_lea.hbm %s0, %s133
          %s135 = smul.u32 64, %s125
          %s136 = sshll.u32 %s134, 4
          %s137 = int_to_ptr.hbm [resolvable:$true] %s136
          %s138 = sshll.u32 %s121, 4
          %s139 = int_to_ptr.vmem [resolvable:$true] %s138
          %s140 = sshll.u32 %s135, 4
          %144 = dma.hbm_to_vmem [thread:$0]  (%p131), %s137, %s140, %s139, %s118, 1024, 1024, 64
        $region20: #{tpu_custom_call.1} parent=15 // pred_fallthru
          _
        // Predicated region
        $region21: #{tpu_custom_call.1} parent=15 // pred_check
          %p145 = pneg %p63
        $region22: #{tpu_custom_call.1} parent=15 // pred_check_branch
          %147 = sbr.rel (%p145) target = $region24
        $region23: #{tpu_custom_call.1} parent=15 // pred_region
          %s148 = sand.u32 %s53, 1
          %s149 = scalar_lea.sflag [#allocation6], %s148
          %s150 = sand.u32 %s53, 1
          %s151 = smul.addr %s150, 832
          %s152 = scalar_lea.vmem [#allocation5], %s151
          %s153 = smul.u32 13, %s17
          %s154 = ssub.s32 25, %s153
          %p155 = scmp.lt.s32.totalorder %s154, 13
          %s156 = scalar_select %p155, %s154, 13
          %s157 = smul.u32 8, %s156
          %s158 = smul.u32 %s157, 8
          %s159 = ssub.s32 832, %s158
          %s160 = sshll.u32 %s159, 4
          %161 = vsyncadd %s149, %s160
          %p162 = scmp.ne.s32.totalorder 0, %s158
          %s163 = smul.addr %s153, 8
          %s164 = smul.addr %s163, 8
          %s165 = scalar_lea.hbm %s1, %s164
          %s166 = smul.u32 64, %s156
          %s167 = sshll.u32 %s165, 4
          %s168 = int_to_ptr.hbm [resolvable:$true] %s167
          %s169 = sshll.u32 %s152, 4
          %s170 = int_to_ptr.vmem [resolvable:$true] %s169
          %s171 = sshll.u32 %s166, 4
          %175 = dma.hbm_to_vmem [thread:$0]  (%p162), %s168, %s171, %s170, %s149, 1024, 1024, 64
        $region24: #{tpu_custom_call.1} parent=15 // pred_fallthru
          _
      $region16: #{tpu_custom_call.1} parent=5 // pred_fallthru
        _
      %p176 = scmp.le.s32.totalorder 1, %s17
      %p177 = scmp.lt.s32.totalorder %s17, 3
      %p178 = pnand %p176, %p177
      %p179 = pneg %p178
      // Predicated region
      $region25: #{tpu_custom_call.1} parent=5 // pred_check
        _
      $region26: #{tpu_custom_call.1} parent=5 // pred_check_branch
        %181 = sbr.rel (%p178) target = $region28
      $region27: #{tpu_custom_call.1} parent=5 // pred_region
        %s182 = ssub.s32 %s17, 1
        %s183 = sand.u32 %s30, 1
        %s184 = scalar_lea.sflag [#allocation3], %s183
        %s185 = sand.u32 %s30, 1
        %s186 = smul.addr %s185, 832
        %s187 = scalar_lea.vmem [#allocation2], %s186
        // Predicated region
        $region29: #{tpu_custom_call.1} parent=27 // pred_check
          %p188 = pneg %p43
        $region30: #{tpu_custom_call.1} parent=27 // pred_check_branch
          %190 = sbr.rel (%p188) target = $region32
        $region31: #{tpu_custom_call.1} parent=27 // pred_region
          %192 = dma.done %s184, 13312
        $region32: #{tpu_custom_call.1} parent=27 // pred_fallthru
          _
        %s193 = sand.u32 %s56, 1
        %s194 = scalar_lea.sflag [#allocation6], %s193
        %s195 = sand.u32 %s56, 1
        %s196 = smul.addr %s195, 832
        %s197 = scalar_lea.vmem [#allocation5], %s196
        // Predicated region
        $region33: #{tpu_custom_call.1} parent=27 // pred_check
          %p198 = pneg %p69
        $region34: #{tpu_custom_call.1} parent=27 // pred_check_branch
          %200 = sbr.rel (%p198) target = $region36
        $region35: #{tpu_custom_call.1} parent=27 // pred_region
          %202 = dma.done %s194, 13312
        $region36: #{tpu_custom_call.1} parent=27 // pred_fallthru
          _
        %s203 = sand.u32 %s30, 1
        %s204 = scalar_lea.sflag [#allocation3], %s203
        %s205 = sand.u32 %s30, 1
        %s206 = smul.addr %s205, 832
        %s207 = scalar_lea.vmem [#allocation2], %s206
        %p208 = pneg %p43
        %p209 = pneg %p40
        %s210 = sand.u32 %s56, 1
        %s211 = scalar_lea.sflag [#allocation6], %s210
        %s212 = sand.u32 %s56, 1
        %s213 = smul.addr %s212, 832
        %s214 = scalar_lea.vmem [#allocation5], %s213
        %p215 = pneg %p69
        %p216 = pneg %p66
        %p217 = pneg %p95
        %p218 = pneg %p92
        %s219 = sand.u32 %s82, 1
        %s220 = scalar_lea.sflag [#allocation4], %s219
        %s221 = sand.u32 %s82, 1
        %s222 = smul.addr %s221, 832
        %s223 = scalar_lea.vmem [#allocation7], %s222
        %s224 = smul.u32 13, %s22
        %s225 = ssub.s32 25, %s224
        %p226 = scmp.lt.s32.totalorder %s225, 13
        %s227 = scalar_select %p226, %s225, 13
        %s228 = smul.u32 8, %s227
        %s229 = smul.u32 %s228, 8
        %s230 = smul.u32 13, %s22
        %s231 = ssub.s32 25, %s230
        %p232 = scmp.lt.s32.totalorder %s231, 13
        %s233 = scalar_select %p232, %s231, 13
        %s234 = smul.u32 8, %s233
        %s235 = smul.u32 %s234, 8
        %s236 = smul.u32 13, %s22
        %s237 = ssub.s32 25, %s236
        %p238 = scmp.lt.s32.totalorder %s237, 13
        %s239 = scalar_select %p238, %s237, 13
        %s240 = smul.u32 8, %s239
        %s241 = smul.u32 %s240, 8
        %v242 = vld [vmem:[%s187] sm:$0xff]
        %v243 = vld [vmem:[%s187 + $0x8] sm:$0xff]
        %v244 = vld [vmem:[%s187 + $0x10] sm:$0xff]
        %v245 = vld [vmem:[%s187 + $0x18] sm:$0xff]
        %v246 = vld [vmem:[%s187 + $0x20] sm:$0xff]
        %v247 = vld [vmem:[%s187 + $0x28] sm:$0xff]
        %v248 = vld [vmem:[%s187 + $0x30] sm:$0xff]
        %v249 = vld [vmem:[%s187 + $0x38] sm:$0xff]
        %v250 = vld [vmem:[%s187 + $0x40] sm:$0xff]
        %v251 = vld [vmem:[%s187 + $0x48] sm:$0xff]
        %v252 = vld [vmem:[%s187 + $0x50] sm:$0xff]
        %v253 = vld [vmem:[%s187 + $0x58] sm:$0xff]
        %v254 = vld [vmem:[%s187 + $0x60] sm:$0xff]
        %v255 = vld [vmem:[%s187 + $0x68] sm:$0xff]
        %v256 = vld [vmem:[%s187 + $0x70] sm:$0xff]
        %v257 = vld [vmem:[%s187 + $0x78] sm:$0xff]
        %v258 = vld [vmem:[%s187 + $0x80] sm:$0xff]
        %v259 = vld [vmem:[%s187 + $0x88] sm:$0xff]
        %v260 = vld [vmem:[%s187 + $0x90] sm:$0xff]
        %v261 = vld [vmem:[%s187 + $0x98] sm:$0xff]
        %v262 = vld [vmem:[%s187 + $0xa0] sm:$0xff]
        %v263 = vld [vmem:[%s187 + $0xa8] sm:$0xff]
        %v264 = vld [vmem:[%s187 + $0xb0] sm:$0xff]
        %v265 = vld [vmem:[%s187 + $0xb8] sm:$0xff]
        %v266 = vld [vmem:[%s187 + $0xc0] sm:$0xff]
        %v267 = vld [vmem:[%s187 + $0xc8] sm:$0xff]
        %v268 = vld [vmem:[%s187 + $0xd0] sm:$0xff]
        %v269 = vld [vmem:[%s187 + $0xd8] sm:$0xff]
        %v270 = vld [vmem:[%s187 + $0xe0] sm:$0xff]
        %v271 = vld [vmem:[%s187 + $0xe8] sm:$0xff]
        %v272 = vld [vmem:[%s187 + $0xf0] sm:$0xff]
        %v273 = vld [vmem:[%s187 + $0xf8] sm:$0xff]
        %v274 = vld [vmem:[%s187 + $0x100] sm:$0xff]
        %v275 = vld [vmem:[%s187 + $0x108] sm:$0xff]
        %v276 = vld [vmem:[%s187 + $0x110] sm:$0xff]
        %v277 = vld [vmem:[%s187 + $0x118] sm:$0xff]
        %v278 = vld [vmem:[%s187 + $0x120] sm:$0xff]
        %v279 = vld [vmem:[%s187 + $0x128] sm:$0xff]
        %v280 = vld [vmem:[%s187 + $0x130] sm:$0xff]
        %v281 = vld [vmem:[%s187 + $0x138] sm:$0xff]
        %v282 = vld [vmem:[%s187 + $0x140] sm:$0xff]
        %v283 = vld [vmem:[%s187 + $0x148] sm:$0xff]
        %v284 = vld [vmem:[%s187 + $0x150] sm:$0xff]
        %v285 = vld [vmem:[%s187 + $0x158] sm:$0xff]
        %v286 = vld [vmem:[%s187 + $0x160] sm:$0xff]
        %v287 = vld [vmem:[%s187 + $0x168] sm:$0xff]
        %v288 = vld [vmem:[%s187 + $0x170] sm:$0xff]
        %v289 = vld [vmem:[%s187 + $0x178] sm:$0xff]
        %v290 = vld [vmem:[%s187 + $0x180] sm:$0xff]
        %v291 = vld [vmem:[%s187 + $0x188] sm:$0xff]
        %v292 = vld [vmem:[%s187 + $0x190] sm:$0xff]
        %v293 = vld [vmem:[%s187 + $0x198] sm:$0xff]
        %v294 = vld [vmem:[%s187 + $0x1a0] sm:$0xff]
        %v295 = vld [vmem:[%s187 + $0x1a8] sm:$0xff]
        %v296 = vld [vmem:[%s187 + $0x1b0] sm:$0xff]
        %v297 = vld [vmem:[%s187 + $0x1b8] sm:$0xff]
        %v298 = vld [vmem:[%s187 + $0x1c0] sm:$0xff]
        %v299 = vld [vmem:[%s187 + $0x1c8] sm:$0xff]
        %v300 = vld [vmem:[%s187 + $0x1d0] sm:$0xff]
        %v301 = vld [vmem:[%s187 + $0x1d8] sm:$0xff]
        %v302 = vld [vmem:[%s187 + $0x1e0] sm:$0xff]
        %v303 = vld [vmem:[%s187 + $0x1e8] sm:$0xff]
        %v304 = vld [vmem:[%s187 + $0x1f0] sm:$0xff]
        %v305 = vld [vmem:[%s187 + $0x1f8] sm:$0xff]
        %v306 = vld [vmem:[%s187 + $0x200] sm:$0xff]
        %v307 = vld [vmem:[%s187 + $0x208] sm:$0xff]
        %v308 = vld [vmem:[%s187 + $0x210] sm:$0xff]
        %v309 = vld [vmem:[%s187 + $0x218] sm:$0xff]
        %v310 = vld [vmem:[%s187 + $0x220] sm:$0xff]
        %v311 = vld [vmem:[%s187 + $0x228] sm:$0xff]
        %v312 = vld [vmem:[%s187 + $0x230] sm:$0xff]
        %v313 = vld [vmem:[%s187 + $0x238] sm:$0xff]
        %v314 = vld [vmem:[%s187 + $0x240] sm:$0xff]
        %v315 = vld [vmem:[%s187 + $0x248] sm:$0xff]
        %v316 = vld [vmem:[%s187 + $0x250] sm:$0xff]
        %v317 = vld [vmem:[%s187 + $0x258] sm:$0xff]
        %v318 = vld [vmem:[%s187 + $0x260] sm:$0xff]
        %v319 = vld [vmem:[%s187 + $0x268] sm:$0xff]
        %v320 = vld [vmem:[%s187 + $0x270] sm:$0xff]
        %v321 = vld [vmem:[%s187 + $0x278] sm:$0xff]
        %v322 = vld [vmem:[%s187 + $0x280] sm:$0xff]
        %v323 = vld [vmem:[%s187 + $0x288] sm:$0xff]
        %v324 = vld [vmem:[%s187 + $0x290] sm:$0xff]
        %v325 = vld [vmem:[%s187 + $0x298] sm:$0xff]
        %v326 = vld [vmem:[%s187 + $0x2a0] sm:$0xff]
        %v327 = vld [vmem:[%s187 + $0x2a8] sm:$0xff]
        %v328 = vld [vmem:[%s187 + $0x2b0] sm:$0xff]
        %v329 = vld [vmem:[%s187 + $0x2b8] sm:$0xff]
        %v330 = vld [vmem:[%s187 + $0x2c0] sm:$0xff]
        %v331 = vld [vmem:[%s187 + $0x2c8] sm:$0xff]
        %v332 = vld [vmem:[%s187 + $0x2d0] sm:$0xff]
        %v333 = vld [vmem:[%s187 + $0x2d8] sm:$0xff]
        %v334 = vld [vmem:[%s187 + $0x2e0] sm:$0xff]
        %v335 = vld [vmem:[%s187 + $0x2e8] sm:$0xff]
        %v336 = vld [vmem:[%s187 + $0x2f0] sm:$0xff]
        %v337 = vld [vmem:[%s187 + $0x2f8] sm:$0xff]
        %v338 = vld [vmem:[%s187 + $0x300] sm:$0xff]
        %v339 = vld [vmem:[%s187 + $0x308] sm:$0xff]
        %v340 = vld [vmem:[%s187 + $0x310] sm:$0xff]
        %v341 = vld [vmem:[%s187 + $0x318] sm:$0xff]
        %v342 = vld [vmem:[%s187 + $0x320] sm:$0xff]
        %v343 = vld [vmem:[%s187 + $0x328] sm:$0xff]
        %v344 = vld [vmem:[%s187 + $0x330] sm:$0xff]
        %v345 = vld [vmem:[%s187 + $0x338] sm:$0xff]
        %v346 = vld [vmem:[%s197] sm:$0xff]
        %v347 = vld [vmem:[%s197 + $0x8] sm:$0xff]
        %v348 = vld [vmem:[%s197 + $0x10] sm:$0xff]
        %v349 = vld [vmem:[%s197 + $0x18] sm:$0xff]
        %v350 = vld [vmem:[%s197 + $0x20] sm:$0xff]
        %v351 = vld [vmem:[%s197 + $0x28] sm:$0xff]
        %v352 = vld [vmem:[%s197 + $0x30] sm:$0xff]
        %v353 = vld [vmem:[%s197 + $0x38] sm:$0xff]
        %v354 = vld [vmem:[%s197 + $0x40] sm:$0xff]
        %v355 = vld [vmem:[%s197 + $0x48] sm:$0xff]
        %v356 = vld [vmem:[%s197 + $0x50] sm:$0xff]
        %v357 = vld [vmem:[%s197 + $0x58] sm:$0xff]
        %v358 = vld [vmem:[%s197 + $0x60] sm:$0xff]
        %v359 = vld [vmem:[%s197 + $0x68] sm:$0xff]
        %v360 = vld [vmem:[%s197 + $0x70] sm:$0xff]
        %v361 = vld [vmem:[%s197 + $0x78] sm:$0xff]
        %v362 = vld [vmem:[%s197 + $0x80] sm:$0xff]
        %v363 = vld [vmem:[%s197 + $0x88] sm:$0xff]
        %v364 = vld [vmem:[%s197 + $0x90] sm:$0xff]
        %v365 = vld [vmem:[%s197 + $0x98] sm:$0xff]
        %v366 = vld [vmem:[%s197 + $0xa0] sm:$0xff]
        %v367 = vld [vmem:[%s197 + $0xa8] sm:$0xff]
        %v368 = vld [vmem:[%s197 + $0xb0] sm:$0xff]
        %v369 = vld [vmem:[%s197 + $0xb8] sm:$0xff]
        %v370 = vld [vmem:[%s197 + $0xc0] sm:$0xff]
        %v371 = vld [vmem:[%s197 + $0xc8] sm:$0xff]
        %v372 = vld [vmem:[%s197 + $0xd0] sm:$0xff]
        %v373 = vld [vmem:[%s197 + $0xd8] sm:$0xff]
        %v374 = vld [vmem:[%s197 + $0xe0] sm:$0xff]
        %v375 = vld [vmem:[%s197 + $0xe8] sm:$0xff]
        %v376 = vld [vmem:[%s197 + $0xf0] sm:$0xff]
        %v377 = vld [vmem:[%s197 + $0xf8] sm:$0xff]
        %v378 = vld [vmem:[%s197 + $0x100] sm:$0xff]
        %v379 = vld [vmem:[%s197 + $0x108] sm:$0xff]
        %v380 = vld [vmem:[%s197 + $0x110] sm:$0xff]
        %v381 = vld [vmem:[%s197 + $0x118] sm:$0xff]
        %v382 = vld [vmem:[%s197 + $0x120] sm:$0xff]
        %v383 = vld [vmem:[%s197 + $0x128] sm:$0xff]
        %v384 = vld [vmem:[%s197 + $0x130] sm:$0xff]
        %v385 = vld [vmem:[%s197 + $0x138] sm:$0xff]
        %v386 = vld [vmem:[%s197 + $0x140] sm:$0xff]
        %v387 = vld [vmem:[%s197 + $0x148] sm:$0xff]
        %v388 = vld [vmem:[%s197 + $0x150] sm:$0xff]
        %v389 = vld [vmem:[%s197 + $0x158] sm:$0xff]
        %v390 = vld [vmem:[%s197 + $0x160] sm:$0xff]
        %v391 = vld [vmem:[%s197 + $0x168] sm:$0xff]
        %v392 = vld [vmem:[%s197 + $0x170] sm:$0xff]
        %v393 = vld [vmem:[%s197 + $0x178] sm:$0xff]
        %v394 = vld [vmem:[%s197 + $0x180] sm:$0xff]
        %v395 = vld [vmem:[%s197 + $0x188] sm:$0xff]
        %v396 = vld [vmem:[%s197 + $0x190] sm:$0xff]
        %v397 = vld [vmem:[%s197 + $0x198] sm:$0xff]
        %v398 = vld [vmem:[%s197 + $0x1a0] sm:$0xff]
        %v399 = vld [vmem:[%s197 + $0x1a8] sm:$0xff]
        %v400 = vld [vmem:[%s197 + $0x1b0] sm:$0xff]
        %v401 = vld [vmem:[%s197 + $0x1b8] sm:$0xff]
        %v402 = vld [vmem:[%s197 + $0x1c0] sm:$0xff]
        %v403 = vld [vmem:[%s197 + $0x1c8] sm:$0xff]
        %v404 = vld [vmem:[%s197 + $0x1d0] sm:$0xff]
        %v405 = vld [vmem:[%s197 + $0x1d8] sm:$0xff]
        %v406 = vld [vmem:[%s197 + $0x1e0] sm:$0xff]
        %v407 = vld [vmem:[%s197 + $0x1e8] sm:$0xff]
        %v408 = vld [vmem:[%s197 + $0x1f0] sm:$0xff]
        %v409 = vld [vmem:[%s197 + $0x1f8] sm:$0xff]
        %v410 = vld [vmem:[%s197 + $0x200] sm:$0xff]
        %v411 = vld [vmem:[%s197 + $0x208] sm:$0xff]
        %v412 = vld [vmem:[%s197 + $0x210] sm:$0xff]
        %v413 = vld [vmem:[%s197 + $0x218] sm:$0xff]
        %v414 = vld [vmem:[%s197 + $0x220] sm:$0xff]
        %v415 = vld [vmem:[%s197 + $0x228] sm:$0xff]
        %v416 = vld [vmem:[%s197 + $0x230] sm:$0xff]
        %v417 = vld [vmem:[%s197 + $0x238] sm:$0xff]
        %v418 = vld [vmem:[%s197 + $0x240] sm:$0xff]
        %v419 = vld [vmem:[%s197 + $0x248] sm:$0xff]
        %v420 = vld [vmem:[%s197 + $0x250] sm:$0xff]
        %v421 = vld [vmem:[%s197 + $0x258] sm:$0xff]
        %v422 = vld [vmem:[%s197 + $0x260] sm:$0xff]
        %v423 = vld [vmem:[%s197 + $0x268] sm:$0xff]
        %v424 = vld [vmem:[%s197 + $0x270] sm:$0xff]
        %v425 = vld [vmem:[%s197 + $0x278] sm:$0xff]
        %v426 = vld [vmem:[%s197 + $0x280] sm:$0xff]
        %v427 = vld [vmem:[%s197 + $0x288] sm:$0xff]
        %v428 = vld [vmem:[%s197 + $0x290] sm:$0xff]
        %v429 = vld [vmem:[%s197 + $0x298] sm:$0xff]
        %v430 = vld [vmem:[%s197 + $0x2a0] sm:$0xff]
        %v431 = vld [vmem:[%s197 + $0x2a8] sm:$0xff]
        %v432 = vld [vmem:[%s197 + $0x2b0] sm:$0xff]
        %v433 = vld [vmem:[%s197 + $0x2b8] sm:$0xff]
        %v434 = vld [vmem:[%s197 + $0x2c0] sm:$0xff]
        %v435 = vld [vmem:[%s197 + $0x2c8] sm:$0xff]
        %v436 = vld [vmem:[%s197 + $0x2d0] sm:$0xff]
        %v437 = vld [vmem:[%s197 + $0x2d8] sm:$0xff]
        %v438 = vld [vmem:[%s197 + $0x2e0] sm:$0xff]
        %v439 = vld [vmem:[%s197 + $0x2e8] sm:$0xff]
        %v440 = vld [vmem:[%s197 + $0x2f0] sm:$0xff]
        %v441 = vld [vmem:[%s197 + $0x2f8] sm:$0xff]
        %v442 = vld [vmem:[%s197 + $0x300] sm:$0xff]
        %v443 = vld [vmem:[%s197 + $0x308] sm:$0xff]
        %v444 = vld [vmem:[%s197 + $0x310] sm:$0xff]
        %v445 = vld [vmem:[%s197 + $0x318] sm:$0xff]
        %v446 = vld [vmem:[%s197 + $0x320] sm:$0xff]
        %v447 = vld [vmem:[%s197 + $0x328] sm:$0xff]
        %v448 = vld [vmem:[%s197 + $0x330] sm:$0xff]
        %v449 = vld [vmem:[%s197 + $0x338] sm:$0xff]
        %v450 = vadd.f32 %v242, %v346
        %v451 = vadd.f32 %v243, %v347
        %v452 = vadd.f32 %v244, %v348
        %v453 = vadd.f32 %v245, %v349
        %v454 = vadd.f32 %v246, %v350
        %v455 = vadd.f32 %v247, %v351
        %v456 = vadd.f32 %v248, %v352
        %v457 = vadd.f32 %v249, %v353
        %v458 = vadd.f32 %v250, %v354
        %v459 = vadd.f32 %v251, %v355
        %v460 = vadd.f32 %v252, %v356
        %v461 = vadd.f32 %v253, %v357
        %v462 = vadd.f32 %v254, %v358
        %v463 = vadd.f32 %v255, %v359
        %v464 = vadd.f32 %v256, %v360
        %v465 = vadd.f32 %v257, %v361
        %v466 = vadd.f32 %v258, %v362
        %v467 = vadd.f32 %v259, %v363
        %v468 = vadd.f32 %v260, %v364
        %v469 = vadd.f32 %v261, %v365
        %v470 = vadd.f32 %v262, %v366
        %v471 = vadd.f32 %v263, %v367
        %v472 = vadd.f32 %v264, %v368
        %v473 = vadd.f32 %v265, %v369
        %v474 = vadd.f32 %v266, %v370
        %v475 = vadd.f32 %v267, %v371
        %v476 = vadd.f32 %v268, %v372
        %v477 = vadd.f32 %v269, %v373
        %v478 = vadd.f32 %v270, %v374
        %v479 = vadd.f32 %v271, %v375
        %v480 = vadd.f32 %v272, %v376
        %v481 = vadd.f32 %v273, %v377
        %v482 = vadd.f32 %v274, %v378
        %v483 = vadd.f32 %v275, %v379
        %v484 = vadd.f32 %v276, %v380
        %v485 = vadd.f32 %v277, %v381
        %v486 = vadd.f32 %v278, %v382
        %v487 = vadd.f32 %v279, %v383
        %v488 = vadd.f32 %v280, %v384
        %v489 = vadd.f32 %v281, %v385
        %v490 = vadd.f32 %v282, %v386
        %v491 = vadd.f32 %v283, %v387
        %v492 = vadd.f32 %v284, %v388
        %v493 = vadd.f32 %v285, %v389
        %v494 = vadd.f32 %v286, %v390
        %v495 = vadd.f32 %v287, %v391
        %v496 = vadd.f32 %v288, %v392
        %v497 = vadd.f32 %v289, %v393
        %v498 = vadd.f32 %v290, %v394
        %v499 = vadd.f32 %v291, %v395
        %v500 = vadd.f32 %v292, %v396
        %v501 = vadd.f32 %v293, %v397
        %v502 = vadd.f32 %v294, %v398
        %v503 = vadd.f32 %v295, %v399
        %v504 = vadd.f32 %v296, %v400
        %v505 = vadd.f32 %v297, %v401
        %v506 = vadd.f32 %v298, %v402
        %v507 = vadd.f32 %v299, %v403
        %v508 = vadd.f32 %v300, %v404
        %v509 = vadd.f32 %v301, %v405
        %v510 = vadd.f32 %v302, %v406
        %v511 = vadd.f32 %v303, %v407
        %v512 = vadd.f32 %v304, %v408
        %v513 = vadd.f32 %v305, %v409
        %v514 = vadd.f32 %v306, %v410
        %v515 = vadd.f32 %v307, %v411
        %v516 = vadd.f32 %v308, %v412
        %v517 = vadd.f32 %v309, %v413
        %v518 = vadd.f32 %v310, %v414
        %v519 = vadd.f32 %v311, %v415
        %v520 = vadd.f32 %v312, %v416
        %v521 = vadd.f32 %v313, %v417
        %v522 = vadd.f32 %v314, %v418
        %v523 = vadd.f32 %v315, %v419
        %v524 = vadd.f32 %v316, %v420
        %v525 = vadd.f32 %v317, %v421
        %v526 = vadd.f32 %v318, %v422
        %v527 = vadd.f32 %v319, %v423
        %v528 = vadd.f32 %v320, %v424
        %v529 = vadd.f32 %v321, %v425
        %v530 = vadd.f32 %v322, %v426
        %v531 = vadd.f32 %v323, %v427
        %v532 = vadd.f32 %v324, %v428
        %v533 = vadd.f32 %v325, %v429
        %v534 = vadd.f32 %v326, %v430
        %v535 = vadd.f32 %v327, %v431
        %v536 = vadd.f32 %v328, %v432
        %v537 = vadd.f32 %v329, %v433
        %v538 = vadd.f32 %v330, %v434
        %v539 = vadd.f32 %v331, %v435
        %v540 = vadd.f32 %v332, %v436
        %v541 = vadd.f32 %v333, %v437
        %v542 = vadd.f32 %v334, %v438
        %v543 = vadd.f32 %v335, %v439
        %v544 = vadd.f32 %v336, %v440
        %v545 = vadd.f32 %v337, %v441
        %v546 = vadd.f32 %v338, %v442
        %v547 = vadd.f32 %v339, %v443
        %v548 = vadd.f32 %v340, %v444
        %v549 = vadd.f32 %v341, %v445
        %v550 = vadd.f32 %v342, %v446
        %v551 = vadd.f32 %v343, %v447
        %v552 = vadd.f32 %v344, %v448
        %v553 = vadd.f32 %v345, %v449
        %554 = vst [vmem:[%s223] sm:$0xff] %v450
        %555 = vst [vmem:[%s223 + $0x8] sm:$0xff] %v451
        %556 = vst [vmem:[%s223 + $0x10] sm:$0xff] %v452
        %557 = vst [vmem:[%s223 + $0x18] sm:$0xff] %v453
        %558 = vst [vmem:[%s223 + $0x20] sm:$0xff] %v454
        %559 = vst [vmem:[%s223 + $0x28] sm:$0xff] %v455
        %560 = vst [vmem:[%s223 + $0x30] sm:$0xff] %v456
        %561 = vst [vmem:[%s223 + $0x38] sm:$0xff] %v457
        %562 = vst [vmem:[%s223 + $0x40] sm:$0xff] %v458
        %563 = vst [vmem:[%s223 + $0x48] sm:$0xff] %v459
        %564 = vst [vmem:[%s223 + $0x50] sm:$0xff] %v460
        %565 = vst [vmem:[%s223 + $0x58] sm:$0xff] %v461
        %566 = vst [vmem:[%s223 + $0x60] sm:$0xff] %v462
        %567 = vst [vmem:[%s223 + $0x68] sm:$0xff] %v463
        %568 = vst [vmem:[%s223 + $0x70] sm:$0xff] %v464
        %569 = vst [vmem:[%s223 + $0x78] sm:$0xff] %v465
        %570 = vst [vmem:[%s223 + $0x80] sm:$0xff] %v466
        %571 = vst [vmem:[%s223 + $0x88] sm:$0xff] %v467
        %572 = vst [vmem:[%s223 + $0x90] sm:$0xff] %v468
        %573 = vst [vmem:[%s223 + $0x98] sm:$0xff] %v469
        %574 = vst [vmem:[%s223 + $0xa0] sm:$0xff] %v470
        %575 = vst [vmem:[%s223 + $0xa8] sm:$0xff] %v471
        %576 = vst [vmem:[%s223 + $0xb0] sm:$0xff] %v472
        %577 = vst [vmem:[%s223 + $0xb8] sm:$0xff] %v473
        %578 = vst [vmem:[%s223 + $0xc0] sm:$0xff] %v474
        %579 = vst [vmem:[%s223 + $0xc8] sm:$0xff] %v475
        %580 = vst [vmem:[%s223 + $0xd0] sm:$0xff] %v476
        %581 = vst [vmem:[%s223 + $0xd8] sm:$0xff] %v477
        %582 = vst [vmem:[%s223 + $0xe0] sm:$0xff] %v478
        %583 = vst [vmem:[%s223 + $0xe8] sm:$0xff] %v479
        %584 = vst [vmem:[%s223 + $0xf0] sm:$0xff] %v480
        %585 = vst [vmem:[%s223 + $0xf8] sm:$0xff] %v481
        %586 = vst [vmem:[%s223 + $0x100] sm:$0xff] %v482
        %587 = vst [vmem:[%s223 + $0x108] sm:$0xff] %v483
        %588 = vst [vmem:[%s223 + $0x110] sm:$0xff] %v484
        %589 = vst [vmem:[%s223 + $0x118] sm:$0xff] %v485
        %590 = vst [vmem:[%s223 + $0x120] sm:$0xff] %v486
        %591 = vst [vmem:[%s223 + $0x128] sm:$0xff] %v487
        %592 = vst [vmem:[%s223 + $0x130] sm:$0xff] %v488
        %593 = vst [vmem:[%s223 + $0x138] sm:$0xff] %v489
        %594 = vst [vmem:[%s223 + $0x140] sm:$0xff] %v490
        %595 = vst [vmem:[%s223 + $0x148] sm:$0xff] %v491
        %596 = vst [vmem:[%s223 + $0x150] sm:$0xff] %v492
        %597 = vst [vmem:[%s223 + $0x158] sm:$0xff] %v493
        %598 = vst [vmem:[%s223 + $0x160] sm:$0xff] %v494
        %599 = vst [vmem:[%s223 + $0x168] sm:$0xff] %v495
        %600 = vst [vmem:[%s223 + $0x170] sm:$0xff] %v496
        %601 = vst [vmem:[%s223 + $0x178] sm:$0xff] %v497
        %602 = vst [vmem:[%s223 + $0x180] sm:$0xff] %v498
        %603 = vst [vmem:[%s223 + $0x188] sm:$0xff] %v499
        %604 = vst [vmem:[%s223 + $0x190] sm:$0xff] %v500
        %605 = vst [vmem:[%s223 + $0x198] sm:$0xff] %v501
        %606 = vst [vmem:[%s223 + $0x1a0] sm:$0xff] %v502
        %607 = vst [vmem:[%s223 + $0x1a8] sm:$0xff] %v503
        %608 = vst [vmem:[%s223 + $0x1b0] sm:$0xff] %v504
        %609 = vst [vmem:[%s223 + $0x1b8] sm:$0xff] %v505
        %610 = vst [vmem:[%s223 + $0x1c0] sm:$0xff] %v506
        %611 = vst [vmem:[%s223 + $0x1c8] sm:$0xff] %v507
        %612 = vst [vmem:[%s223 + $0x1d0] sm:$0xff] %v508
        %613 = vst [vmem:[%s223 + $0x1d8] sm:$0xff] %v509
        %614 = vst [vmem:[%s223 + $0x1e0] sm:$0xff] %v510
        %615 = vst [vmem:[%s223 + $0x1e8] sm:$0xff] %v511
        %616 = vst [vmem:[%s223 + $0x1f0] sm:$0xff] %v512
        %617 = vst [vmem:[%s223 + $0x1f8] sm:$0xff] %v513
        %618 = vst [vmem:[%s223 + $0x200] sm:$0xff] %v514
        %619 = vst [vmem:[%s223 + $0x208] sm:$0xff] %v515
        %620 = vst [vmem:[%s223 + $0x210] sm:$0xff] %v516
        %621 = vst [vmem:[%s223 + $0x218] sm:$0xff] %v517
        %622 = vst [vmem:[%s223 + $0x220] sm:$0xff] %v518
        %623 = vst [vmem:[%s223 + $0x228] sm:$0xff] %v519
        %624 = vst [vmem:[%s223 + $0x230] sm:$0xff] %v520
        %625 = vst [vmem:[%s223 + $0x238] sm:$0xff] %v521
        %626 = vst [vmem:[%s223 + $0x240] sm:$0xff] %v522
        %627 = vst [vmem:[%s223 + $0x248] sm:$0xff] %v523
        %628 = vst [vmem:[%s223 + $0x250] sm:$0xff] %v524
        %629 = vst [vmem:[%s223 + $0x258] sm:$0xff] %v525
        %630 = vst [vmem:[%s223 + $0x260] sm:$0xff] %v526
        %631 = vst [vmem:[%s223 + $0x268] sm:$0xff] %v527
        %632 = vst [vmem:[%s223 + $0x270] sm:$0xff] %v528
        %633 = vst [vmem:[%s223 + $0x278] sm:$0xff] %v529
        %634 = vst [vmem:[%s223 + $0x280] sm:$0xff] %v530
        %635 = vst [vmem:[%s223 + $0x288] sm:$0xff] %v531
        %636 = vst [vmem:[%s223 + $0x290] sm:$0xff] %v532
        %637 = vst [vmem:[%s223 + $0x298] sm:$0xff] %v533
        %638 = vst [vmem:[%s223 + $0x2a0] sm:$0xff] %v534
        %639 = vst [vmem:[%s223 + $0x2a8] sm:$0xff] %v535
        %640 = vst [vmem:[%s223 + $0x2b0] sm:$0xff] %v536
        %641 = vst [vmem:[%s223 + $0x2b8] sm:$0xff] %v537
        %642 = vst [vmem:[%s223 + $0x2c0] sm:$0xff] %v538
        %643 = vst [vmem:[%s223 + $0x2c8] sm:$0xff] %v539
        %644 = vst [vmem:[%s223 + $0x2d0] sm:$0xff] %v540
        %645 = vst [vmem:[%s223 + $0x2d8] sm:$0xff] %v541
        %646 = vst [vmem:[%s223 + $0x2e0] sm:$0xff] %v542
        %647 = vst [vmem:[%s223 + $0x2e8] sm:$0xff] %v543
        %648 = vst [vmem:[%s223 + $0x2f0] sm:$0xff] %v544
        %649 = vst [vmem:[%s223 + $0x2f8] sm:$0xff] %v545
        %650 = vst [vmem:[%s223 + $0x300] sm:$0xff] %v546
        %651 = vst [vmem:[%s223 + $0x308] sm:$0xff] %v547
        %652 = vst [vmem:[%s223 + $0x310] sm:$0xff] %v548
        %653 = vst [vmem:[%s223 + $0x318] sm:$0xff] %v549
        %654 = vst [vmem:[%s223 + $0x320] sm:$0xff] %v550
        %655 = vst [vmem:[%s223 + $0x328] sm:$0xff] %v551
        %656 = vst [vmem:[%s223 + $0x330] sm:$0xff] %v552
        %657 = vst [vmem:[%s223 + $0x338] sm:$0xff] %v553
        %s658 = sand.u32 %s82, 1
        %s659 = scalar_lea.sflag [#allocation4], %s658
        %s660 = sand.u32 %s82, 1
        %s661 = smul.addr %s660, 832
        %s662 = scalar_lea.vmem [#allocation7], %s661
        // Predicated region
        $region37: #{tpu_custom_call.1} parent=27 // pred_check
          %p663 = pneg %p92
        $region38: #{tpu_custom_call.1} parent=27 // pred_check_branch
          %665 = sbr.rel (%p663) target = $region40
        $region39: #{tpu_custom_call.1} parent=27 // pred_region
          %s666 = smul.u32 13, %s22
          %s667 = ssub.s32 25, %s666
          %p668 = scmp.lt.s32.totalorder %s667, 13
          %s669 = scalar_select %p668, %s667, 13
          %s670 = smul.u32 8, %s669
          %s671 = smul.u32 %s670, 8
          %s672 = ssub.s32 832, %s671
          %s673 = sshll.u32 %s672, 4
          %674 = vsyncadd %s659, %s673
          %p675 = scmp.ne.s32.totalorder 0, %s671
          %s676 = smul.addr %s666, 8
          %s677 = smul.addr %s676, 8
          %s678 = scalar_lea.hbm %s2, %s677
          %s679 = smul.u32 64, %s669
          %s680 = sshll.u32 %s662, 4
          %s681 = int_to_ptr.vmem [resolvable:$true] %s680
          %s682 = sshll.u32 %s678, 4
          %s683 = int_to_ptr.hbm [resolvable:$true] %s682
          %s684 = sshll.u32 %s679, 4
          %688 = dma.vmem_to_hbm [thread:$0]  (%p675), %s681, %s684, %s683, %s659, 1024, 1024, 64
        $region40: #{tpu_custom_call.1} parent=27 // pred_fallthru
          _
      $region28: #{tpu_custom_call.1} parent=5 // pred_fallthru
        _
      %p689 = scmp.le.s32.totalorder 2, %s17
      // Predicated region
      $region41: #{tpu_custom_call.1} parent=5 // pred_check
        %p690 = pneg %p689
      $region42: #{tpu_custom_call.1} parent=5 // pred_check_branch
        %692 = sbr.rel (%p690) target = $region44
      $region43: #{tpu_custom_call.1} parent=5 // pred_region
        %s693 = ssub.s32 %s17, 2
        // Predicated region
        $region45: #{tpu_custom_call.1} parent=43 // pred_check
          %p694 = pneg %p98
        $region46: #{tpu_custom_call.1} parent=43 // pred_check_branch
          %696 = sbr.rel (%p694) target = $region48
        $region47: #{tpu_custom_call.1} parent=43 // pred_region
          %s697 = sand.u32 %s83, 1
          %s698 = scalar_lea.sflag [#allocation4], %s697
          %s699 = sand.u32 %s83, 1
          %s700 = smul.addr %s699, 832
          %s701 = scalar_lea.vmem [#allocation7], %s700
          %703 = dma.done %s698, 13312
        $region48: #{tpu_custom_call.1} parent=43 // pred_fallthru
          _
      $region44: #{tpu_custom_call.1} parent=5 // pred_fallthru
        _
    $region6: #{tpu_custom_call.1} parent=1 // loop_footer
      %s21 = sadd.s32 1, %s17
    $region7: #{tpu_custom_call.1} parent=1 // loop_footer_branch
      %16 = sbr.rel target = $region3
    $region8: #{tpu_custom_call.1} parent=1 // loop_exit
      _
    %704 = vsyncpa [#allocation3], 1
    %s705 = scalar_lea.sflag [#allocation3], 1
    %706 = vsyncpa %s705, 1
    %707 = vsyncpa [#allocation6], 1
    %s708 = scalar_lea.sflag [#allocation6], 1
    %709 = vsyncpa %s708, 1
    %710 = vsyncpa [#allocation4], 1
    %s711 = scalar_lea.sflag [#allocation4], 1
    %712 = vsyncpa %s711, 1

</llo_original>
